<compile_context>
chip_gen: v7x
topology: tpu7x:2x2x1
jax: 0.10.0
libtpu: 0.0.40
codegen_flags: <defaults>
</compile_context>

<pallas_src>
import jax
import jax.numpy as jnp
from jax.experimental import pallas as pl
from jax.experimental.pallas import tpu as pltpu


def _round_up(n, m):
    return ((n + m - 1) // m) * m


def actor_kernel(x_ref, w1_ref, b1_ref, w2_ref, b2_ref, out_ref):
    # fc1 + ReLU  (MXU matmul, f32 accumulation)
    x = x_ref[...]                                                  # (TB, F)
    h = jnp.dot(x, w1_ref[...], preferred_element_type=jnp.float32)
    h = jnp.maximum(h + b1_ref[...], 0.0)                           # (TB, H) f32

    # action head (cast h to the weight dtype so bf16 weights feed the MXU
    # natively; a no-op for the f32 path)
    logits = jnp.dot(h.astype(w2_ref.dtype), w2_ref[...],
                     preferred_element_type=jnp.float32) + b2_ref[...]  # (TB, A)

    # numerically-stable softmax over the (small, masked) action axis.
    # Exact division so each row sums to 1.0 within f32 rounding.
    m = jnp.max(logits, axis=-1, keepdims=True)
    e = jnp.exp(logits - m)
    denom = jnp.sum(e, axis=-1, keepdims=True)
    out_ref[...] = (e / denom).astype(out_ref.dtype)


def _batch_tile(B, block_b):
    """Batch tile: multiple of 8 (or exactly B), >= 2 grid steps once B is
    big enough (so v7x's second TensorCore gets work), capped at block_b."""
    tb = min(block_b, max(256, _round_up((B + 1) // 2, 8)))
    if tb >= B:
        return B          # single full-extent block (always a legal block dim)
    return tb


def actor_forward(x, w1, b1, w2, b2, *, block_b=1024):
    """x: (B, ...) -> action probabilities (B, num_actions), float32.

    w1: (F, H), b1: (1, H), w2: (H, A), b2: (1, A) -- already transposed from
    PyTorch's (out, in) layout.  Passing bf16 x / w1 / w2 halves their HBM
    traffic; accumulation, biases and the softmax stay in float32.
    """
    B = x.shape[0]
    x2d = x.reshape(B, -1)                       # flatten(start_dim=1)
    F = x2d.shape[1]
    H = w1.shape[1]
    A = w2.shape[1]

    TB = _batch_tile(B, block_b)
    grid = (pl.cdiv(B, TB),)                     # partial last tile is masked

    return pl.pallas_call(
        actor_kernel,
        out_shape=jax.ShapeDtypeStruct((B, A), jnp.float32),
        grid=grid,
        in_specs=[
            pl.BlockSpec((TB, F), lambda i: (i, 0)),   # x tile (pipelined)
            pl.BlockSpec((F, H), lambda i: (0, 0)),    # W1 resident in VMEM
            pl.BlockSpec((1, H), lambda i: (0, 0)),    # b1 resident
            pl.BlockSpec((H, A), lambda i: (0, 0)),    # W2 resident
            pl.BlockSpec((1, A), lambda i: (0, 0)),    # b2 resident
        ],
        out_specs=pl.BlockSpec((TB, A), lambda i: (i, 0)),
        compiler_params=pltpu.CompilerParams(
            dimension_semantics=("parallel",),         # megacore on v7x
        ),
    )(x2d, w1, b1, w2, b2)


def init_actor_params(key, num_inputs, num_actions, hidden=100):
    """Deterministic synthetic parameters (PyTorch-style uniform fan-in init),
    stored already transposed for row-major (in, out) matmuls."""
    k1, k2, k3, k4 = jax.random.split(key, 4)
    bound1 = 1.0 / jnp.sqrt(num_inputs)
    bound2 = 1.0 / jnp.sqrt(hidden)
    w1 = jax.random.uniform(k1, (num_inputs, hidden), jnp.float32, -bound1, bound1)
    b1 = jax.random.uniform(k2, (1, hidden), jnp.float32, -bound1, bound1)
    w2 = jax.random.uniform(k3, (hidden, num_actions), jnp.float32, -bound2, bound2)
    b2 = jax.random.uniform(k4, (1, num_actions), jnp.float32, -bound2, bound2)
    return w1, b1, w2, b2


if __name__ == "__main__":
    # Highway-env intersection observation: (B, vehicles=5, features=5) -> num_inputs=25
    B, V, Fdim = 4, 5, 5
    num_inputs = V * Fdim
    num_actions = 3
    hidden = 100

    key = jax.random.PRNGKey(0)
    kx, kp = jax.random.split(key)
    x = jax.random.normal(kx, (B, V, Fdim), jnp.float32)
    w1, b1, w2, b2 = init_actor_params(kp, num_inputs, num_actions, hidden)

    probs = actor_forward(x, w1, b1, w2, b2)
    jax.block_until_ready(probs)

    # sanity check against a pure-JAX reference
    x2d = x.reshape(B, -1)
    h_ref = jnp.maximum(x2d @ w1 + b1, 0.0)
    ref = jax.nn.softmax(h_ref @ w2 + b2, axis=1)
    assert probs.shape == (B, num_actions)
    assert jnp.allclose(probs, ref, atol=2e-3), "mismatch vs reference"
    assert jnp.allclose(jnp.sum(probs, axis=1), 1.0, atol=1e-4)

    print("KERNEL_OK")
</pallas_src>

<mosaic_0001>
module attributes {stable_mosaic.version = 11 : i64} {
  func.func @actor_kernel(%arg0: i32, %arg1: memref<4x25xf32, #tpu.memory_space<vmem>>, %arg2: memref<25x100xf32, #tpu.memory_space<vmem>>, %arg3: memref<1x100xf32, #tpu.memory_space<vmem>>, %arg4: memref<100x3xf32, #tpu.memory_space<vmem>>, %arg5: memref<1x3xf32, #tpu.memory_space<vmem>>, %arg6: memref<4x3xf32, #tpu.memory_space<vmem>>) attributes {dimension_semantics = [#tpu.dimension_semantics<parallel>], iteration_bounds = array<i64: 1>, scalar_prefetch = 0 : i64, scratch_operands = 0 : i64, tpu.core_type = #tpu.core_type<tc>, window_params = [{transform_indices = @transform_0, window_bounds = array<i64: 4, 25>}, {pipeline_mode = #tpu.pipeline_mode<synchronous>, transform_indices = @transform_1, window_bounds = array<i64: 25, 100>}, {pipeline_mode = #tpu.pipeline_mode<synchronous>, transform_indices = @transform_2, window_bounds = array<i64: 1, 100>}, {pipeline_mode = #tpu.pipeline_mode<synchronous>, transform_indices = @transform_3, window_bounds = array<i64: 100, 3>}, {pipeline_mode = #tpu.pipeline_mode<synchronous>, transform_indices = @transform_4, window_bounds = array<i64: 1, 3>}, {transform_indices = @transform_5, window_bounds = array<i64: 4, 3>}]} {
    %c0 = arith.constant 0 : index
    %c0_0 = arith.constant 0 : index
    %0 = vector.load %arg1[%c0, %c0_0] : memref<4x25xf32, #tpu.memory_space<vmem>>, vector<4x25xf32>
    %c0_1 = arith.constant 0 : index
    %c0_2 = arith.constant 0 : index
    %1 = vector.load %arg2[%c0_1, %c0_2] : memref<25x100xf32, #tpu.memory_space<vmem>>, vector<25x100xf32>
    %cst = arith.constant dense<0.000000e+00> : vector<4x100xf32>
    %2 = tpu.matmul %0, %1, %cst {dimension_numbers = #tpu.dot_dimension_numbers<[1], [0], [0], [1], [0, 0, 1, 1], [], []>} : vector<4x25xf32>, vector<25x100xf32>, vector<4x100xf32> -> vector<4x100xf32>
    %c0_3 = arith.constant 0 : index
    %c0_4 = arith.constant 0 : index
    %3 = vector.load %arg3[%c0_3, %c0_4] : memref<1x100xf32, #tpu.memory_space<vmem>>, vector<1x100xf32>
    %4 = vector.broadcast %3 : vector<1x100xf32> to vector<4x100xf32>
    %5 = arith.addf %2, %4 : vector<4x100xf32>
    %cst_5 = arith.constant 0.000000e+00 : f32
    %6 = vector.broadcast %cst_5 : f32 to vector<4x100xf32>
    %7 = arith.maximumf %5, %6 : vector<4x100xf32>
    %c0_6 = arith.constant 0 : index
    %c0_7 = arith.constant 0 : index
    %8 = vector.load %arg4[%c0_6, %c0_7] : memref<100x3xf32, #tpu.memory_space<vmem>>, vector<100x3xf32>
    %cst_8 = arith.constant dense<0.000000e+00> : vector<4x3xf32>
    %9 = tpu.matmul %7, %8, %cst_8 {dimension_numbers = #tpu.dot_dimension_numbers<[1], [0], [0], [1], [0, 0, 1, 1], [], []>} : vector<4x100xf32>, vector<100x3xf32>, vector<4x3xf32> -> vector<4x3xf32>
    %c0_9 = arith.constant 0 : index
    %c0_10 = arith.constant 0 : index
    %10 = vector.load %arg5[%c0_9, %c0_10] : memref<1x3xf32, #tpu.memory_space<vmem>>, vector<1x3xf32>
    %11 = vector.broadcast %10 : vector<1x3xf32> to vector<4x3xf32>
    %12 = arith.addf %9, %11 : vector<4x3xf32>
    %cst_11 = arith.constant dense<0xFF800000> : vector<4xf32>
    %13 = vector.multi_reduction <maximumf>, %12, %cst_11 [1] : vector<4x3xf32> to vector<4xf32>
    %14 = vector.shape_cast %13 : vector<4xf32> to vector<4x1xf32>
    %15 = vector.broadcast %14 : vector<4x1xf32> to vector<4x3xf32>
    %16 = arith.subf %12, %15 : vector<4x3xf32>
    %17 = math.exp %16 : vector<4x3xf32>
    %cst_12 = arith.constant dense<0.000000e+00> : vector<4xf32>
    %18 = vector.multi_reduction <add>, %17, %cst_12 [1] : vector<4x3xf32> to vector<4xf32>
    %19 = vector.shape_cast %18 : vector<4xf32> to vector<4x1xf32>
    %20 = vector.broadcast %19 : vector<4x1xf32> to vector<4x3xf32>
    %21 = arith.divf %17, %20 : vector<4x3xf32>
    %c0_13 = arith.constant 0 : index
    %c0_14 = arith.constant 0 : index
    %22 = vector.load %arg6[%c0_13, %c0_14] : memref<4x3xf32, #tpu.memory_space<vmem>>, vector<4x3xf32>
    tpu.vector_store %arg6[%c0_13, %c0_14], %21 {strides = array<i32>} : memref<4x3xf32, #tpu.memory_space<vmem>>, vector<4x3xf32>,
    return
  }
  func.func @transform_0(%arg0: i32) -> (i32, i32) {
    %c0_i32 = arith.constant 0 : i32
    %c0_i32_0 = arith.constant 0 : i32
    return %arg0, %c0_i32 : i32, i32
  }
  func.func @transform_1(%arg0: i32) -> (i32, i32) {
    %c0_i32 = arith.constant 0 : i32
    %c0_i32_0 = arith.constant 0 : i32
    %c0_i32_1 = arith.constant 0 : i32
    return %c0_i32, %c0_i32_0 : i32, i32
  }
  func.func @transform_2(%arg0: i32) -> (i32, i32) {
    %c0_i32 = arith.constant 0 : i32
    %c0_i32_0 = arith.constant 0 : i32
    %c0_i32_1 = arith.constant 0 : i32
    return %c0_i32, %c0_i32_0 : i32, i32
  }
  func.func @transform_3(%arg0: i32) -> (i32, i32) {
    %c0_i32 = arith.constant 0 : i32
    %c0_i32_0 = arith.constant 0 : i32
    %c0_i32_1 = arith.constant 0 : i32
    return %c0_i32, %c0_i32_0 : i32, i32
  }
  func.func @transform_4(%arg0: i32) -> (i32, i32) {
    %c0_i32 = arith.constant 0 : i32
    %c0_i32_0 = arith.constant 0 : i32
    %c0_i32_1 = arith.constant 0 : i32
    return %c0_i32, %c0_i32_0 : i32, i32
  }
  func.func @transform_5(%arg0: i32) -> (i32, i32) {
    %c0_i32 = arith.constant 0 : i32
    %c0_i32_0 = arith.constant 0 : i32
    return %arg0, %c0_i32 : i32, i32
  }
}

</mosaic_0001>

<llo_original>
// kernel: tpu_custom_call.1
$region0: #{tpu_custom_call.1}
  #allocation0 [shape = 'u32[]', space=smem, size = 0x4, offset = 0x4, fixed_abs, tag = 'smem constant byte address 0x4 - core index']
  #allocation1 [shape = 'u32[144,128]{1,0:T(1,128)}', space=vmem, size = 0x12000, scoped, tag = 'internal scratch']
  %s0 = inlined_call_operand.vmem [shape: f32[4,25], index: 0, kind: input, shape index: {}]
  %s1 = inlined_call_operand.vmem [shape: f32[25,100], index: 1, kind: input, shape index: {}]
  %s2 = inlined_call_operand.vmem [shape: f32[1,100], index: 2, kind: input, shape index: {}]
  %s3 = inlined_call_operand.vmem [shape: f32[100,3], index: 3, kind: input, shape index: {}]
  %s4 = inlined_call_operand.vmem [shape: f32[1,3], index: 4, kind: input, shape index: {}]
  %s5 = inlined_call_operand.hbm [shape: f32[4,3], index: 5, kind: output, shape index: {}]
  %s6 = sld [smem:[#allocation0]]
  $region30: #{tpu_custom_call.1} parent=0
    _
  %s8 = ssub.s32 1, %s6
  %s9 = scalar_select 0, %s8, %s6
  $region1: #{tpu_custom_call.1} parent=0
    #allocation2 [shape = 'u8[2048]{0}', space=vmem, size = 0x800, scoped, tag = 'output window, operand 0, single buffered']
    #allocation3 [shape = 's32[1]{0}', space=sflag, size = 0x4, scoped, tag = 'scoped memory for tpu_custom_call.1']
    %10 = vsyncpa [#allocation3], 0
    // Predicated region
    $region2: #{tpu_custom_call.1} parent=1 // pred_check
      _
    $region3: #{tpu_custom_call.1} parent=1 // pred_check_branch
      %12 = sbr.rel (0) target = $region5
    $region4: #{tpu_custom_call.1} parent=1 // pred_region
      _
    $region5: #{tpu_custom_call.1} parent=1 // pred_fallthru
      _
    // Predicated region
    $region6: #{tpu_custom_call.1} parent=1 // pred_check
      _
    $region7: #{tpu_custom_call.1} parent=1 // pred_check_branch
      %14 = sbr.rel (0) target = $region9
    $region8: #{tpu_custom_call.1} parent=1 // pred_region
      _
    $region9: #{tpu_custom_call.1} parent=1 // pred_fallthru
      _
    // Predicated region
    $region10: #{tpu_custom_call.1} parent=1 // pred_check
      _
    $region11: #{tpu_custom_call.1} parent=1 // pred_check_branch
      %16 = sbr.rel (0) target = $region13
    $region12: #{tpu_custom_call.1} parent=1 // pred_region
      _
    $region13: #{tpu_custom_call.1} parent=1 // pred_fallthru
      _
    // Predicated region
    $region14: #{tpu_custom_call.1} parent=1 // pred_check
      _
    $region15: #{tpu_custom_call.1} parent=1 // pred_check_branch
      %18 = sbr.rel (0) target = $region17
    $region16: #{tpu_custom_call.1} parent=1 // pred_region
      _
    $region17: #{tpu_custom_call.1} parent=1 // pred_fallthru
      _
    // Predicated region
    $region18: #{tpu_custom_call.1} parent=1 // pred_check
      _
    $region19: #{tpu_custom_call.1} parent=1 // pred_check_branch
      %20 = sbr.rel (0) target = $region21
    $region20: #{tpu_custom_call.1} parent=1 // pred_region
      _
    $region21: #{tpu_custom_call.1} parent=1 // pred_fallthru
      _
    %v21 = vld [vmem:[%s0] sm:$0xf]
    %v22 = vld [vmem:[%s1] sm:$0xff]
    %v23 = vld [vmem:[%s1 + $0x8] sm:$0xff]
    %v24 = vld [vmem:[%s1 + $0x10] sm:$0xff]
    %v25 = vld [vmem:[%s1 + $0x18] sm:$0x1]
    %v26 = vld [vmem:[%s2] sm:$0x1]
    %v28 = vlaneseq
    %v29 = vshrl.u32 %v28, 7
    %v30 = vsub.s32 0, %v29
    %v31 = vrot.slane %v26, %v30
    %vm33 = vcmask 203776
    %v35 = vsel %vm33, %v21, 0
    %vm37 = vcmask 1040384
    %v39 = vsel %vm37, %v25, 0
    %41 = vmatprep.subr.mxu0 0.0
    %42 = vmatpush1.msra.mxu0 %v22
    %43 = vmatprep.subr.mxu0 0.0
    %44 = vmatpush1.msra.mxu0 %v23
    %45 = vmatprep.subr.mxu0 0.0
    %46 = vmatpush1.msra.mxu0 %v24
    %47 = vmatprep.subr.mxu0 0.0
    %48 = vmatpush1.msra.mxu0 %v39
    %49 = vmatprep.subr.mxu0 0.0
    %50 = vmatpush1.msra.mxu0 0.0
    %51 = vmatprep.subr.mxu0 0.0
    %52 = vmatpush1.msra.mxu0 0.0
    %53 = vmatprep.subr.mxu0 0.0
    %54 = vmatpush1.msra.mxu0 0.0
    %55 = vmatprep.subr.mxu0 0.0
    %56 = vmatpush1.msra.mxu0 0.0
    %57 = vmatprep.subr.mxu0 0.0
    %58 = vmatpush1.msra.mxu0 0.0
    %59 = vmatprep.subr.mxu0 0.0
    %60 = vmatpush1.msra.mxu0 0.0
    %61 = vmatprep.subr.mxu0 0.0
    %62 = vmatpush1.msra.mxu0 0.0
    %63 = vmatprep.subr.mxu0 0.0
    %64 = vmatpush1.msra.mxu0 0.0
    %65 = vmatprep.subr.mxu0 0.0
    %66 = vmatpush1.msra.mxu0 0.0
    %67 = vmatprep.subr.mxu0 0.0
    %68 = vmatpush1.msra.mxu0 0.0
    %69 = vmatprep.subr.mxu0 0.0
    %70 = vmatpush1.msra.mxu0 0.0
    %71 = vmatprep.subr.mxu0 0.0
    %72 = vmatpush1.msra.mxu0 0.0
    %73 = vmatprep.subr.mxu0 0.0
    %74 = vmatpush1.msra.mxu0 0.0
    %75 = vmatprep.subr.mxu0 0.0
    %76 = vmatpush1.msra.mxu0 0.0
    %77 = vmatprep.subr.mxu0 0.0
    %78 = vmatpush1.msra.mxu0 0.0
    %79 = vmatprep.subr.mxu0 0.0
    %80 = vmatpush1.msra.mxu0 0.0
    %81 = vmatprep.subr.mxu0 0.0
    %82 = vmatpush1.msra.mxu0 0.0
    %83 = vmatprep.subr.mxu0 0.0
    %84 = vmatpush1.msra.mxu0 0.0
    %85 = vmatprep.subr.mxu0 0.0
    %86 = vmatpush1.msra.mxu0 0.0
    %87 = vmatprep.subr.mxu0 0.0
    %88 = vmatpush1.msra.mxu0 0.0
    %89 = vmatprep.subr.mxu0 0.0
    %90 = vmatpush1.msra.mxu0 0.0
    %91 = vmatprep.subr.mxu0 0.0
    %92 = vmatpush1.msra.mxu0 0.0
    %93 = vmatprep.subr.mxu0 0.0
    %94 = vmatpush1.msra.mxu0 0.0
    %95 = vmatprep.subr.mxu0 0.0
    %96 = vmatpush1.msra.mxu0 0.0
    %97 = vmatprep.subr.mxu0 0.0
    %98 = vmatpush1.msra.mxu0 0.0
    %99 = vmatprep.subr.mxu0 0.0
    %100 = vmatpush1.msra.mxu0 0.0
    %101 = vmatprep.subr.mxu0 0.0
    %102 = vmatpush1.msra.mxu0 0.0
    %103 = vmatprep.subr.mxu0 0.0
    %104 = vmatpush1.msra.mxu0 0.0
    %105 = vmatprep.mubr.f32.mxu0 0.0
    %106 = vmatmul.mubr.f32.gmra.mrb[0].mxu0 %v35
    %v107 = vpop.f32.mrb[0].mxu0
    %v108 = vadd.f32 %v31, %v107
    %v109 = vpop.f32.mrb[0].mxu0
    %110 = vdwg.mxu0
    %v111 = vmax.f32 %v108, 0.0
    %v112 = vld [vmem:[%s3] sm:$0xff]
    %v113 = vld [vmem:[%s3 + $0x8] sm:$0xff]
    %v114 = vld [vmem:[%s3 + $0x10] sm:$0xff]
    %v115 = vld [vmem:[%s3 + $0x18] sm:$0xff]
    %v116 = vld [vmem:[%s3 + $0x20] sm:$0xff]
    %v117 = vld [vmem:[%s3 + $0x28] sm:$0xff]
    %v118 = vld [vmem:[%s3 + $0x30] sm:$0xff]
    %v119 = vld [vmem:[%s3 + $0x38] sm:$0xff]
    %v120 = vld [vmem:[%s3 + $0x40] sm:$0xff]
    %v121 = vld [vmem:[%s3 + $0x48] sm:$0xff]
    %v122 = vld [vmem:[%s3 + $0x50] sm:$0xff]
    %v123 = vld [vmem:[%s3 + $0x58] sm:$0xff]
    %v124 = vld [vmem:[%s3 + $0x60] sm:$0xf]
    %v125 = vld [vmem:[%s4] sm:$0x1]
    %v127 = vlaneseq
    %v128 = vshrl.u32 %v127, 7
    %v129 = vsub.s32 0, %v128
    %v130 = vrot.slane %v125, %v129
    %vm132 = vcmask 818176
    %v134 = vsel %vm132, %v111, 0
    %vm136 = vcmask 1043456
    %v138 = vsel %vm136, %v124, 0
    %140 = vmatprep.subr.mxu0 0.0
    %141 = vmatpush1.msra.mxu0 %v112
    %142 = vmatprep.subr.mxu0 0.0
    %143 = vmatpush1.msra.mxu0 %v113
    %144 = vmatprep.subr.mxu0 0.0
    %145 = vmatpush1.msra.mxu0 %v114
    %146 = vmatprep.subr.mxu0 0.0
    %147 = vmatpush1.msra.mxu0 %v115
    %148 = vmatprep.subr.mxu0 0.0
    %149 = vmatpush1.msra.mxu0 %v116
    %150 = vmatprep.subr.mxu0 0.0
    %151 = vmatpush1.msra.mxu0 %v117
    %152 = vmatprep.subr.mxu0 0.0
    %153 = vmatpush1.msra.mxu0 %v118
    %154 = vmatprep.subr.mxu0 0.0
    %155 = vmatpush1.msra.mxu0 %v119
    %156 = vmatprep.subr.mxu0 0.0
    %157 = vmatpush1.msra.mxu0 %v120
    %158 = vmatprep.subr.mxu0 0.0
    %159 = vmatpush1.msra.mxu0 %v121
    %160 = vmatprep.subr.mxu0 0.0
    %161 = vmatpush1.msra.mxu0 %v122
    %162 = vmatprep.subr.mxu0 0.0
    %163 = vmatpush1.msra.mxu0 %v123
    %164 = vmatprep.subr.mxu0 0.0
    %165 = vmatpush1.msra.mxu0 %v138
    %166 = vmatprep.subr.mxu0 0.0
    %167 = vmatpush1.msra.mxu0 0.0
    %168 = vmatprep.subr.mxu0 0.0
    %169 = vmatpush1.msra.mxu0 0.0
    %170 = vmatprep.subr.mxu0 0.0
    %171 = vmatpush1.msra.mxu0 0.0
    %172 = vmatprep.subr.mxu0 0.0
    %173 = vmatpush1.msra.mxu0 0.0
    %174 = vmatprep.subr.mxu0 0.0
    %175 = vmatpush1.msra.mxu0 0.0
    %176 = vmatprep.subr.mxu0 0.0
    %177 = vmatpush1.msra.mxu0 0.0
    %178 = vmatprep.subr.mxu0 0.0
    %179 = vmatpush1.msra.mxu0 0.0
    %180 = vmatprep.subr.mxu0 0.0
    %181 = vmatpush1.msra.mxu0 0.0
    %182 = vmatprep.subr.mxu0 0.0
    %183 = vmatpush1.msra.mxu0 0.0
    %184 = vmatprep.subr.mxu0 0.0
    %185 = vmatpush1.msra.mxu0 0.0
    %186 = vmatprep.subr.mxu0 0.0
    %187 = vmatpush1.msra.mxu0 0.0
    %188 = vmatprep.subr.mxu0 0.0
    %189 = vmatpush1.msra.mxu0 0.0
    %190 = vmatprep.subr.mxu0 0.0
    %191 = vmatpush1.msra.mxu0 0.0
    %192 = vmatprep.subr.mxu0 0.0
    %193 = vmatpush1.msra.mxu0 0.0
    %194 = vmatprep.subr.mxu0 0.0
    %195 = vmatpush1.msra.mxu0 0.0
    %196 = vmatprep.subr.mxu0 0.0
    %197 = vmatpush1.msra.mxu0 0.0
    %198 = vmatprep.subr.mxu0 0.0
    %199 = vmatpush1.msra.mxu0 0.0
    %200 = vmatprep.subr.mxu0 0.0
    %201 = vmatpush1.msra.mxu0 0.0
    %202 = vmatprep.subr.mxu0 0.0
    %203 = vmatpush1.msra.mxu0 0.0
    %204 = vmatprep.mubr.f32.mxu0 0.0
    %205 = vmatmul.mubr.f32.gmra.mrb[0].mxu0 %v134
    %v206 = vpop.f32.mrb[0].mxu0
    %v207 = vadd.f32 %v130, %v206
    %v208 = vpop.f32.mrb[0].mxu0
    %209 = vdwg.mxu0
    %vm210 = vcmask 19456
    %v211 = vsel %vm210, %v207, -inf
    %212 = vmax.xlane.f32.xlu0 %v211
    %v213 = vpop.xlane.xlu0 %212
    %v214 = vsub.f32 %v207, %v213
    %v215 = vmul.f32 %v214, 1.442695
    %v216 = vpow.pop %v215
    %v217 = vsel %vm210, %v216, 0.0
    %218 = vadd.xlane.f32.xlu0 %v217
    %v219 = vpop.xlane.xlu0 %218
    %v220 = vrcp.pop %v219
    %v221 = vmul.f32 %v216, %v220
    %222 = vst.msk [vmem:[#allocation2] sm:$0xf] %vm210, %v221
    // Predicated region
    $region22: #{tpu_custom_call.1} parent=1 // pred_check
      _
    $region23: #{tpu_custom_call.1} parent=1 // pred_check_branch
      %224 = sbr.rel (0) target = $region25
    $region24: #{tpu_custom_call.1} parent=1 // pred_region
      %s226 = ssub.s32 64, 64
      %227 = vsyncadd [#allocation3], %s226
      %s229 = sshll.u32 [#allocation2], 4
      %s230 = int_to_ptr.vmem [resolvable:$true] %s229
      %232 = dma.vmem_to_hbm [thread:$0]  %s230, 64, %s5, [#allocation3]
    $region25: #{tpu_custom_call.1} parent=1 // pred_fallthru
      _
    // Predicated region
    $region26: #{tpu_custom_call.1} parent=1 // pred_check
      _
    $region27: #{tpu_custom_call.1} parent=1 // pred_check_branch
      %234 = sbr.rel (0) target = $region29
    $region28: #{tpu_custom_call.1} parent=1 // pred_region
      %235 = dma.done [#allocation3], 64
    $region29: #{tpu_custom_call.1} parent=1 // pred_fallthru
      _
    %236 = vsyncpa [#allocation3], 1

</llo_original>
